<compile_context>
chip_gen: v5e
topology: v5e:2x2
jax: 0.10.0
libtpu: 0.0.40
codegen_flags: <defaults>
</compile_context>

<pallas_src>
import jax
import jax.numpy as jnp
from jax.experimental import pallas as pl
from jax.experimental.pallas import tpu as pltpu


def _add_inverse_kernel(x_ref, o_ref):
    """One load, two lane-dense stores.

    x_ref : (rows_tile, LANES)
    o_ref : (2, rows_tile, LANES)   half 0 = x, half 1 = 1 - x
    """
    x = x_ref[...]
    o_ref[0, :, :] = x
    o_ref[1, :, :] = 1 - x          # weakly-typed literal: stays in x's dtype


def _round_up(a, b):
    return (a + b - 1) // b * b


def add_inverse(in_tensor, target, dim=0):
    """Pallas equivalent of AddInverse.forward: cat([x, 1 - x], dim); target passthrough."""
    x = jnp.asarray(in_tensor)
    dim = dim % x.ndim
    shape = x.shape
    D = shape[dim]

    pre = 1
    for s in shape[:dim]:
        pre *= s
    post = 1
    for s in shape[dim + 1:]:
        post *= s
    M = D * post                           # elements per pre-slice
    N = x.size
    out_shape = shape[:dim] + (2 * D,) + shape[dim + 1:]

    if N == 0:                             # degenerate empty tensor
        return jnp.concatenate([x, 1 - x], axis=dim), target

    itemsize = jnp.dtype(x.dtype).itemsize

    # Lane width: largest of 512/256/128 dividing M -> exact out_shape, no pad/slice.
    for lanes in (512, 256, 128):
        if M % lanes == 0:
            LANES = lanes
            M_pad = M
            break
    else:                                  # rare fallback: small tail pad + slice
        LANES = 512
        M_pad = _round_up(M, LANES)

    rows = M_pad // LANES

    # dtype-specific sublane multiple: f32 -> 8, bf16 -> 16, int8/fp8 -> 32.
    sublane = max(8, 32 // itemsize)

    # ~4 MiB input blocks; double-buffered in + (2x) out footprint stays <= ~24 MiB.
    max_block_bytes = 4 * 1024 * 1024
    cap = max(sublane, (max_block_bytes // (LANES * itemsize)) // sublane * sublane)
    # Either the full row extent (always a legal block) or a sublane-multiple tile.
    rows_tile = rows if rows <= cap else cap

    x2 = x.reshape(pre, M)
    if M_pad != M:
        x2 = jnp.pad(x2, ((0, 0), (0, M_pad - M)))
    x3 = x2.reshape(pre, rows, LANES)

    grid = (pre, pl.cdiv(rows, rows_tile))

    out4 = pl.pallas_call(
        _add_inverse_kernel,
        out_shape=jax.ShapeDtypeStruct((pre, 2, rows, LANES), x.dtype),
        grid=grid,
        in_specs=[
            pl.BlockSpec((None, rows_tile, LANES), lambda p, r: (p, r, 0)),
        ],
        out_specs=pl.BlockSpec((None, 2, rows_tile, LANES), lambda p, r: (p, 0, r, 0)),
        compiler_params=pltpu.CompilerParams(
            # Independent tiles; shards across v7x's 2 TCs.
            # TODO(synk): if a v7x profile shows only one TC busy, switch the row
            # axis to pltpu.CORE_PARALLEL.
            dimension_semantics=("parallel", "parallel"),
            vmem_limit_bytes=32 * 1024 * 1024,
        ),
        cost_estimate=pl.CostEstimate(
            flops=N, transcendentals=0, bytes_accessed=3 * N * itemsize),
    )(x3)

    # (pre, 2, rows, LANES) -> (pre, 2, M) -> concatenated shape.  All reshapes are free.
    out3 = out4.reshape(pre, 2, M_pad)
    if M_pad != M:
        out3 = out3[:, :, :M]
    out = out3.reshape(out_shape)
    return out, target


if __name__ == "__main__":
    key = jax.random.PRNGKey(0)
    kx, kt = jax.random.split(key)

    # Small NCHW example consistent with a class2seg-style input.
    x = jax.random.uniform(kx, (2, 4, 16, 16), dtype=jnp.float32)
    target = jax.random.randint(kt, (2,), 0, 4, dtype=jnp.int32)

    out, tgt = add_inverse(x, target, dim=0)
    out = jax.block_until_ready(out)
    tgt = jax.block_until_ready(tgt)

    # Sanity check against plain-JAX reference (default dim=0 path: no pad, no slice).
    ref = jnp.concatenate([x, 1.0 - x], axis=0)
    assert out.shape == (4, 4, 16, 16)
    assert jnp.allclose(out, ref, atol=1e-6)
    assert jnp.array_equal(tgt, target)

    # Exercise the general-dim path (still transpose-free).
    out1, _ = add_inverse(x, target, dim=1)
    assert jnp.allclose(jax.block_until_ready(out1),
                        jnp.concatenate([x, 1.0 - x], axis=1), atol=1e-6)

    # Exercise the unaligned fallback (M % 128 != 0: small tail pad + slice).
    y = jax.random.uniform(kx, (3, 5, 7), dtype=jnp.float32)
    out2, _ = add_inverse(y, target, dim=0)
    assert jnp.allclose(jax.block_until_ready(out2),
                        jnp.concatenate([y, 1.0 - y], axis=0), atol=1e-6)

    print("KERNEL_OK")
</pallas_src>

<mosaic_0001>
module attributes {stable_mosaic.version = 11 : i64} {
  func.func @_add_inverse_kernel(%arg0: i32, %arg1: i32, %arg2: memref<1x4x512xf32, #tpu.memory_space<vmem>>, %arg3: memref<1x2x4x512xf32, #tpu.memory_space<vmem>>) attributes {dimension_semantics = [#tpu.dimension_semantics<parallel>, #tpu.dimension_semantics<parallel>], iteration_bounds = array<i64: 1, 1>, scalar_prefetch = 0 : i64, scratch_operands = 0 : i64, tpu.core_type = #tpu.core_type<tc>, window_params = [{transform_indices = @transform_0, window_bounds = array<i64: 1, 4, 512>}, {transform_indices = @transform_1, window_bounds = array<i64: 1, 2, 4, 512>}]} {
    %c0 = arith.constant 0 : index
    %c0_0 = arith.constant 0 : index
    %c0_1 = arith.constant 0 : index
    %0 = vector.load %arg2[%c0, %c0_0, %c0_1] : memref<1x4x512xf32, #tpu.memory_space<vmem>>, vector<1x4x512xf32>
    %1 = vector.shape_cast %0 : vector<1x4x512xf32> to vector<4x512xf32>
    %c0_2 = arith.constant 0 : index
    %c0_3 = arith.constant 0 : index
    %c0_4 = arith.constant 0 : index
    %c0_5 = arith.constant 0 : index
    %2 = vector.load %arg3[%c0_2, %c0_3, %c0_4, %c0_5] : memref<1x2x4x512xf32, #tpu.memory_space<vmem>>, vector<1x1x4x512xf32>
    %3 = vector.shape_cast %2 : vector<1x1x4x512xf32> to vector<4x512xf32>
    %4 = vector.shape_cast %1 : vector<4x512xf32> to vector<1x1x4x512xf32>
    tpu.vector_store %arg3[%c0_2, %c0_3, %c0_4, %c0_5], %4 {strides = array<i32>} : memref<1x2x4x512xf32, #tpu.memory_space<vmem>>, vector<1x1x4x512xf32>,
    %cst = arith.constant 1.000000e+00 : f32
    %5 = vector.broadcast %cst : f32 to vector<4x512xf32>
    %6 = arith.subf %5, %1 : vector<4x512xf32>
    %c0_6 = arith.constant 0 : index
    %c1 = arith.constant 1 : index
    %c0_7 = arith.constant 0 : index
    %c0_8 = arith.constant 0 : index
    %7 = vector.load %arg3[%c0_6, %c1, %c0_7, %c0_8] : memref<1x2x4x512xf32, #tpu.memory_space<vmem>>, vector<1x1x4x512xf32>
    %8 = vector.shape_cast %7 : vector<1x1x4x512xf32> to vector<4x512xf32>
    %9 = vector.shape_cast %6 : vector<4x512xf32> to vector<1x1x4x512xf32>
    tpu.vector_store %arg3[%c0_6, %c1, %c0_7, %c0_8], %9 {strides = array<i32>} : memref<1x2x4x512xf32, #tpu.memory_space<vmem>>, vector<1x1x4x512xf32>,
    return
  }
  func.func @transform_0(%arg0: i32, %arg1: i32) -> (i32, i32, i32) {
    %c0_i32 = arith.constant 0 : i32
    %c0_i32_0 = arith.constant 0 : i32
    return %arg0, %arg1, %c0_i32 : i32, i32, i32
  }
  func.func @transform_1(%arg0: i32, %arg1: i32) -> (i32, i32, i32, i32) {
    %c0_i32 = arith.constant 0 : i32
    %c0_i32_0 = arith.constant 0 : i32
    %c0_i32_1 = arith.constant 0 : i32
    return %arg0, %c0_i32, %arg1, %c0_i32_0 : i32, i32, i32, i32
  }
}

</mosaic_0001>

<llo_original>
// kernel: tpu_custom_call.1
$region0: #{tpu_custom_call.1}
  #allocation0 [shape = 'u32[]', space=smem, size = 0x4, offset = 0x4, fixed_abs, tag = 'smem constant byte address 0x4 - core index']
  #allocation1 [shape = 'u32[72,128]{1,0:T(1,128)}', space=vmem, size = 0x9000, scoped, tag = 'internal scratch']
  %s0 = inlined_call_operand.hbm [shape: f32[1,4,512], index: 0, kind: input, shape index: {}]
  %s1 = inlined_call_operand.hbm [shape: f32[1,2,4,512], index: 1, kind: output, shape index: {}]
  %s2 = sld [smem:[#allocation0]]
  $region18: #{tpu_custom_call.1} parent=0
    _
  %s4 = ssub.s32 1, %s2
  %s5 = scalar_select 0, %s4, %s2
  $region1: #{tpu_custom_call.1} parent=0
    #allocation2 [shape = 'u8[8192]{0}', space=vmem, size = 0x2000, scoped, tag = 'input window, operand 0, single buffered']
    #allocation3 [shape = 's32[1]{0}', space=sflag, size = 0x4, scoped, tag = 'scoped memory for tpu_custom_call.1']
    #allocation4 [shape = 's32[1]{0}', space=sflag, size = 0x4, scoped, tag = 'scoped memory for tpu_custom_call.1']
    #allocation5 [shape = 'u8[16384]{0}', space=vmem, size = 0x4000, scoped, tag = 'output window, operand 0, single buffered']
    %6 = vsyncpa [#allocation3], 0
    %7 = vsyncpa [#allocation4], 0
    // Predicated region
    $region2: #{tpu_custom_call.1} parent=1 // pred_check
      _
    $region3: #{tpu_custom_call.1} parent=1 // pred_check_branch
      %9 = sbr.rel (0) target = $region5
    $region4: #{tpu_custom_call.1} parent=1 // pred_region
      %11 = vsyncadd [#allocation3], 0
      %s13 = sshll.u32 %s0, 4
      %s14 = int_to_ptr.hbm [resolvable:$true] %s13
      %s15 = sshll.u32 [#allocation2], 4
      %s16 = int_to_ptr.vmem [resolvable:$true] %s15
      %18 = dma.hbm_to_vmem [thread:$0]  %s14, 256, %s16, [#allocation3]
    $region5: #{tpu_custom_call.1} parent=1 // pred_fallthru
      _
    // Predicated region
    $region6: #{tpu_custom_call.1} parent=1 // pred_check
      _
    $region7: #{tpu_custom_call.1} parent=1 // pred_check_branch
      %20 = sbr.rel (0) target = $region9
    $region8: #{tpu_custom_call.1} parent=1 // pred_region
      %22 = dma.done [#allocation3], 256
    $region9: #{tpu_custom_call.1} parent=1 // pred_fallthru
      _
    %v23 = vld [vmem:[#allocation2] sm:$0xff]
    %v24 = vld [vmem:[#allocation2 + $0x8] sm:$0xff]
    %25 = vst [vmem:[#allocation5] sm:$0xff] %v23
    %26 = vst [vmem:[#allocation5 + $0x8] sm:$0xff] %v24
    %v27 = vsub.f32 1.0, %v23
    %v28 = vsub.f32 1.0, %v24
    %s29 = scalar_lea.vmem [#allocation5], 16
    %30 = vst [vmem:[%s29] sm:$0xff] %v27
    %31 = vst [vmem:[%s29 + $0x8] sm:$0xff] %v28
    // Predicated region
    $region10: #{tpu_custom_call.1} parent=1 // pred_check
      _
    $region11: #{tpu_custom_call.1} parent=1 // pred_check_branch
      %33 = sbr.rel (0) target = $region13
    $region12: #{tpu_custom_call.1} parent=1 // pred_region
      %35 = vsyncadd [#allocation4], 0
      %s36 = sshll.u32 [#allocation5], 4
      %s37 = int_to_ptr.vmem [resolvable:$true] %s36
      %s38 = sshll.u32 %s1, 4
      %s39 = int_to_ptr.hbm [resolvable:$true] %s38
      %44 = dma.vmem_to_hbm [thread:$0]  %s37, 512, %s39, [#allocation4], 256, 256, 16
    $region13: #{tpu_custom_call.1} parent=1 // pred_fallthru
      _
    // Predicated region
    $region14: #{tpu_custom_call.1} parent=1 // pred_check
      _
    $region15: #{tpu_custom_call.1} parent=1 // pred_check_branch
      %46 = sbr.rel (0) target = $region17
    $region16: #{tpu_custom_call.1} parent=1 // pred_region
      %48 = dma.done [#allocation4], 512
    $region17: #{tpu_custom_call.1} parent=1 // pred_fallthru
      _
    %49 = vsyncpa [#allocation3], 1
    %50 = vsyncpa [#allocation4], 1

</llo_original>
